<compile_context>
chip_gen: v5e
topology: v5e:2x2
jax: 0.10.0
libtpu: 0.0.40
codegen_flags: <defaults>
</compile_context>

<pallas_src>
import functools

import jax
import jax.numpy as jnp
from jax import lax
from jax.experimental import pallas as pl
from jax.experimental.pallas import tpu as pltpu


# ---------------------------------------------------------------------------
# helpers
# ---------------------------------------------------------------------------

def _layer_norm(v, gamma, beta, eps=1e-5):
    mu = jnp.mean(v, axis=-1, keepdims=True)
    var = jnp.mean((v - mu) ** 2, axis=-1, keepdims=True)
    return (v - mu) * jax.lax.rsqrt(var + eps) * gamma + beta


def _probe_buffered():
    """Feature-detect BlockSpec(pipeline_mode=pl.Buffered(1))."""
    try:
        pl.BlockSpec((8, 128), lambda i: (0, 0), pipeline_mode=pl.Buffered(1))
        return True
    except Exception:
        return False


_HAS_BUFFERED1 = _probe_buffered()


def _physical_vmem_bytes():
    """Per-core VMEM capacity; conservative 64 MiB (v7x) if the query fails."""
    try:
        info = pltpu.get_tpu_info()
        return int(getattr(info, "vmem_capacity_bytes", 64 * 1024 * 1024))
    except Exception:
        return 64 * 1024 * 1024


def _pick_tile(T, preferred=(256, 128)):
    # 256 for the 2x256^2 MXU on v6e/v7x; pass 128 explicitly on v5e (4x128^2).
    for t in preferred:
        if T >= t and T % t == 0:
            return t
    return T


# ---------------------------------------------------------------------------
# kernel 1: LayerNorm1 + fused K|V projection, head-major output
#   kv[b, j, t, :] = head-j slice of LN1(x[b, t]) @ [Wk | Wv]
# Computed once per (batch, kv_tile): hoisted out of the q-tile loop.
# ---------------------------------------------------------------------------
def _kv_proj_kernel(x_ref, wkv_ref, g1_ref, beta1_ref, kv_ref, *,
                    num_heads, head_dim):
    x = x_ref[0].astype(jnp.float32)                                   # (TKV, E)
    ln1 = _layer_norm(x, g1_ref[0], beta1_ref[0]).astype(wkv_ref.dtype)
    kv = jnp.dot(ln1, wkv_ref[...], preferred_element_type=jnp.float32)  # (TKV, 2E)
    kv = kv.astype(kv_ref.dtype)
    h = head_dim
    # one-time head split (outside the O(T^2) attention loop)
    kv3 = jnp.stack([kv[:, j * h:(j + 1) * h] for j in range(2 * num_heads)],
                    axis=0)                                            # (2NH, TKV, h)
    kv_ref[0] = kv3


# ---------------------------------------------------------------------------
# kernel 2: flash causal attention + proj + residual + LN2 + chunked MLP
# grid = (batch, q_tile, kv_tile); kv axis is the innermost "arbitrary" axis.
# ---------------------------------------------------------------------------
def _attn_mlp_kernel(
    x_ref,            # (1, TQ, E)        q-tile rows of x
    kv_ref,           # (1, 2NH, TKV, h)  head-major K|V tile (kernel 1 output)
    wq_ref,           # (E, E)
    wproj_ref,        # (E, E)
    bproj_ref,        # (1, E)
    w1_ref,           # (E, 4E)
    b1_ref,           # (1, 4E)
    w2_ref,           # (4E, E)
    b2_ref,           # (1, E)
    g1_ref, beta1_ref,  # (1, E)
    g2_ref, beta2_ref,  # (1, E)
    out_ref,          # (1, TQ, E)
    q_sc,             # VMEM (NH, TQ, h)  compute_dtype
    m_sc,             # VMEM (NH, TQ, 1)  f32   running max
    l_sc,             # VMEM (NH, TQ, 1)  f32   running denom
    acc_sc,           # VMEM (NH, TQ, h)  f32   running numerator
    *,
    num_heads, head_dim, compute_dtype, mlp_chunk,
):
    NH, h = num_heads, head_dim
    TQ, E = x_ref.shape[1], x_ref.shape[2]
    TKV = kv_ref.shape[2]
    ki = pl.program_id(2)
    n_kv = pl.num_programs(2)
    q0 = pl.program_id(1) * TQ
    k0 = ki * TKV
    # NOTE: scale is embed_size ** -0.5 (not head_dim ** -0.5), per the module.
    scale = jnp.float32(E ** -0.5)

    # ---- per-q-tile init: LN1 + Q projection + flash accumulators ----------
    @pl.when(ki == 0)
    def _init():
        x_q = x_ref[0].astype(jnp.float32)
        ln1_q = _layer_norm(x_q, g1_ref[0], beta1_ref[0]).astype(compute_dtype)
        q = jnp.dot(ln1_q, wq_ref[...], preferred_element_type=jnp.float32) * scale
        q = q.astype(q_sc.dtype)
        q_sc[...] = jnp.stack([q[:, n * h:(n + 1) * h] for n in range(NH)], axis=0)
        m_sc[...] = jnp.full(m_sc.shape, -1e30, jnp.float32)
        l_sc[...] = jnp.zeros(l_sc.shape, jnp.float32)
        acc_sc[...] = jnp.zeros(acc_sc.shape, jnp.float32)

    # ---- online-softmax kv step; skip tiles fully above the causal diagonal --
    @pl.when(k0 <= q0 + TQ - 1)
    def _kv_step():
        kv3 = kv_ref[0]                       # (2NH, TKV, h)
        k3 = kv3[:NH]
        v3 = kv3[NH:]
        s = jnp.einsum("nqd,nkd->nqk", q_sc[...], k3,
                       preferred_element_type=jnp.float32)          # (NH, TQ, TKV)
        row = q0 + lax.broadcasted_iota(jnp.int32, (TQ, TKV), 0)
        col = k0 + lax.broadcasted_iota(jnp.int32, (TQ, TKV), 1)
        s = jnp.where((col <= row)[None, :, :], s, jnp.float32(-1e30))
        m_prev = m_sc[...]
        m_new = jnp.maximum(m_prev, jnp.max(s, axis=-1, keepdims=True))
        alpha = jnp.exp(m_prev - m_new)
        p = jnp.exp(s - m_new)
        l_sc[...] = alpha * l_sc[...] + jnp.sum(p, axis=-1, keepdims=True)
        acc_sc[...] = alpha * acc_sc[...] + jnp.einsum(
            "nqk,nkd->nqd", p.astype(compute_dtype), v3,
            preferred_element_type=jnp.float32)
        m_sc[...] = m_new

    # ---- finalize: proj + residual + LN2 + chunked MLP + residual ----------
    @pl.when(ki == n_kv - 1)
    def _finalize():
        o3 = acc_sc[...] * pl.reciprocal(l_sc[...], approx=True)    # (NH, TQ, h)
        # merge heads into one lane-dense (TQ, E) operand (value-level concat:
        # no per-head masked scratch stores).
        o2 = jnp.concatenate([o3[n] for n in range(NH)], axis=-1)
        attn = jnp.dot(o2.astype(compute_dtype), wproj_ref[...],
                       preferred_element_type=jnp.float32) + bproj_ref[0]
        # TODO(synk): dropout omitted (eval-mode identity).
        x_q = x_ref[0].astype(jnp.float32)
        x1 = x_q + attn

        ln2 = _layer_norm(x1, g2_ref[0], beta2_ref[0]).astype(compute_dtype)
        E4 = w1_ref.shape[1]
        n_chunks = E4 // mlp_chunk
        if n_chunks == 1:
            hmid = jnp.maximum(
                jnp.dot(ln2, w1_ref[...], preferred_element_type=jnp.float32)
                + b1_ref[0], 0.0).astype(compute_dtype)
            ff = jnp.dot(hmid, w2_ref[...], preferred_element_type=jnp.float32)
        else:
            def mlp_body(c, acc):
                c0 = pl.multiple_of(c * mlp_chunk, mlp_chunk)
                hc = jnp.dot(ln2, w1_ref[:, pl.ds(c0, mlp_chunk)],
                             preferred_element_type=jnp.float32)
                hc = hc + b1_ref[0, pl.ds(c0, mlp_chunk)]
                hc = jnp.maximum(hc, 0.0).astype(compute_dtype)
                return acc + jnp.dot(hc, w2_ref[pl.ds(c0, mlp_chunk), :],
                                     preferred_element_type=jnp.float32)
            ff = lax.fori_loop(0, n_chunks, mlp_body,
                               jnp.zeros((TQ, E), jnp.float32), unroll=True)
        ff = ff + b2_ref[0]
        out_ref[0] = (x1 + ff).astype(out_ref.dtype)


# ---------------------------------------------------------------------------
# wrapper
# ---------------------------------------------------------------------------
def transformer_block(x, params, *, compute_dtype=jnp.bfloat16,
                      q_tile=None, kv_tile=None, mlp_chunk=None,
                      single_buffer_invariants=True):
    B, T, E = x.shape
    NH, _, h = params["wq"].shape
    assert NH * h == E, "head_count * (head_size // head_count) must equal embed_size"
    E4 = params["w1"].shape[1]
    csize = jnp.dtype(compute_dtype).itemsize

    if q_tile is None:
        q_tile = _pick_tile(T)
    if kv_tile is None:
        kv_tile = _pick_tile(T)
    assert T % q_tile == 0 and T % kv_tile == 0
    n_q, n_kv = T // q_tile, T // kv_tile

    if mlp_chunk is None:
        mlp_chunk = next((c for c in (1024, 512, 256) if E4 % c == 0 and E4 > c), E4)
    assert E4 % mlp_chunk == 0

    # pack per-head (NH, E, h) weights into lane-dense (E, NH*h) slabs (host-side)
    pack = lambda w: jnp.transpose(w, (1, 0, 2)).reshape(E, NH * h)
    wq_p = pack(params["wq"]).astype(compute_dtype)
    wkv_p = jnp.concatenate([pack(params["wk"]), pack(params["wv"])],
                            axis=1).astype(compute_dtype)
    wproj = params["wproj"].astype(compute_dtype)
    w1 = params["w1"].astype(compute_dtype)
    w2 = params["w2"].astype(compute_dtype)
    bproj, b1, b2 = params["bproj"], params["b1"], params["b2"]
    g1, beta1 = params["g1"], params["beta1"]
    g2, beta2 = params["g2"], params["beta2"]

    use_b1 = single_buffer_invariants and _HAS_BUFFERED1
    wmult = 1 if use_b1 else 2

    def inv_spec(arr, grid_rank):
        # grid-invariant block: full array, constant index, single-buffered.
        zeros = (0,) * arr.ndim
        idx = (lambda b, k: zeros) if grid_rank == 2 else (lambda b, q, k: zeros)
        if use_b1:
            return pl.BlockSpec(arr.shape, idx, pipeline_mode=pl.Buffered(1))
        return pl.BlockSpec(arr.shape, idx)

    # generation-aware VMEM cap: ~51 MiB on v7x (64 MiB phys), ~102 MiB on v5e/v6e.
    cap = int(_physical_vmem_bytes() * 0.8)

    # ----------------- kernel 1: LN1 + K|V projection ------------------------
    kv_kernel = functools.partial(_kv_proj_kernel, num_heads=NH, head_dim=h)
    k1_bytes = (wmult * 2 * E * E * csize
                + 2 * kv_tile * E * x.dtype.itemsize
                + 4 * kv_tile * E * csize
                + 8 * kv_tile * E * 4 + (2 << 20))
    k1_vmem = int(min(cap, max(16 << 20, k1_bytes)))
    kv_hm = pl.pallas_call(
        kv_kernel,
        out_shape=jax.ShapeDtypeStruct((B, 2 * NH, T, h), compute_dtype),
        grid_spec=pltpu.PrefetchScalarGridSpec(
            num_scalar_prefetch=0,
            grid=(B, n_kv),
            in_specs=[
                pl.BlockSpec((1, kv_tile, E), lambda b, k: (b, k, 0)),
                inv_spec(wkv_p, 2),
                inv_spec(g1, 2),
                inv_spec(beta1, 2),
            ],
            out_specs=pl.BlockSpec((1, 2 * NH, kv_tile, h),
                                   lambda b, k: (b, 0, k, 0)),
        ),
        compiler_params=pltpu.CompilerParams(
            dimension_semantics=("parallel", "parallel"),
            vmem_limit_bytes=k1_vmem,
        ),
        cost_estimate=pl.CostEstimate(
            flops=int(4 * B * T * E * E),
            transcendentals=int(B * T),
            bytes_accessed=int(B * T * E * x.dtype.itemsize
                               + 2 * B * T * E * csize + 2 * E * E * csize),
        ),
    )(x, wkv_p, g1, beta1)

    # ----------------- kernel 2: attention + MLP -----------------------------
    attn_kernel = functools.partial(
        _attn_mlp_kernel, num_heads=NH, head_dim=h,
        compute_dtype=compute_dtype, mlp_chunk=mlp_chunk)

    weight_bytes = (2 * E * E + 2 * E * E4) * csize + (2 * E4 + 6 * E) * 4
    block_bytes = (2 * q_tile * E * x.dtype.itemsize
                   + 4 * kv_tile * E * csize
                   + 2 * q_tile * E * x.dtype.itemsize)
    scratch_bytes = (NH * q_tile * max(h, 128) * (csize + 4)
                     + 2 * NH * q_tile * 128 * 4)
    interm_bytes = (4 * NH * q_tile * kv_tile * 4
                    + 2 * q_tile * mlp_chunk * 4
                    + 8 * q_tile * E * 4)
    k2_bytes = wmult * weight_bytes + block_bytes + scratch_bytes + interm_bytes + (4 << 20)
    k2_vmem = int(min(cap, max(32 << 20, k2_bytes)))

    out = pl.pallas_call(
        attn_kernel,
        out_shape=jax.ShapeDtypeStruct((B, T, E), x.dtype),
        grid_spec=pltpu.PrefetchScalarGridSpec(
            num_scalar_prefetch=0,
            grid=(B, n_q, n_kv),
            in_specs=[
                pl.BlockSpec((1, q_tile, E), lambda b, q, k: (b, q, 0)),
                pl.BlockSpec((1, 2 * NH, kv_tile, h), lambda b, q, k: (b, 0, k, 0)),
                inv_spec(wq_p, 3),
                inv_spec(wproj, 3),
                inv_spec(bproj, 3),
                inv_spec(w1, 3),
                inv_spec(b1, 3),
                inv_spec(w2, 3),
                inv_spec(b2, 3),
                inv_spec(g1, 3),
                inv_spec(beta1, 3),
                inv_spec(g2, 3),
                inv_spec(beta2, 3),
            ],
            out_specs=pl.BlockSpec((1, q_tile, E), lambda b, q, k: (b, q, 0)),
            scratch_shapes=[
                pltpu.VMEM((NH, q_tile, h), compute_dtype),   # q (scaled)
                pltpu.VMEM((NH, q_tile, 1), jnp.float32),     # running max
                pltpu.VMEM((NH, q_tile, 1), jnp.float32),     # running denom
                pltpu.VMEM((NH, q_tile, h), jnp.float32),     # running numerator
            ],
        ),
        compiler_params=pltpu.CompilerParams(
            dimension_semantics=("parallel", "parallel", "arbitrary"),
            vmem_limit_bytes=k2_vmem,
        ),
        cost_estimate=pl.CostEstimate(
            flops=int(B * T * E * (20 * E + 2 * T)),
            transcendentals=int(B * NH * T * T),
            bytes_accessed=int(2 * B * T * E * x.dtype.itemsize
                               + 2 * B * n_q * T * E * csize + weight_bytes),
        ),
    )(x, kv_hm, wq_p, wproj, bproj, w1, b1, w2, b2, g1, beta1, g2, beta2)
    return out


# ---------------------------------------------------------------------------
# pure-JAX reference (mirrors the PyTorch forward), f32 throughout
# ---------------------------------------------------------------------------
def transformer_block_ref(x, params):
    B, T, E = x.shape
    NH = params["wq"].shape[0]

    def ln(v, g, b):
        mu = jnp.mean(v, axis=-1, keepdims=True)
        var = jnp.mean((v - mu) ** 2, axis=-1, keepdims=True)
        return (v - mu) / jnp.sqrt(var + 1e-5) * g[0] + b[0]

    ln1 = ln(x, params["g1"], params["beta1"])
    causal = jnp.tril(jnp.ones((T, T), dtype=bool))
    scale = E ** -0.5

    heads = []
    for hd in range(NH):
        q = ln1 @ params["wq"][hd]
        k = ln1 @ params["wk"][hd]
        v = ln1 @ params["wv"][hd]
        wei = jnp.einsum("btd,bsd->bts", q, k) * scale
        wei = jnp.where(causal, wei, -jnp.inf)
        wei = jax.nn.softmax(wei, axis=-1)
        heads.append(jnp.einsum("bts,bsd->btd", wei, v))
    attn = jnp.concatenate(heads, axis=-1) @ params["wproj"] + params["bproj"][0]
    x1 = x + attn

    ln2 = ln(x1, params["g2"], params["beta2"])
    hdd = jnp.maximum(ln2 @ params["w1"] + params["b1"][0], 0.0)
    ff = hdd @ params["w2"] + params["b2"][0]
    return x1 + ff


if __name__ == "__main__":
    # small shapes consistent with the module
    B, T = 2, 8                 # batch, sequence (block_size = 8, full context)
    E = 32                      # embed_size
    NH = 4                      # head_count
    H = 32                      # head_size -> per-head dim = H // NH = 8
    h = H // NH
    E4 = 4 * E

    key = jax.random.PRNGKey(0)
    ks = jax.random.split(key, 16)
    s = 0.1  # small init scale

    params = {
        "wq": jax.random.normal(ks[0], (NH, E, h), jnp.float32) * s,
        "wk": jax.random.normal(ks[1], (NH, E, h), jnp.float32) * s,
        "wv": jax.random.normal(ks[2], (NH, E, h), jnp.float32) * s,
        "wproj": jax.random.normal(ks[3], (E, E), jnp.float32) * s,
        "bproj": jax.random.normal(ks[4], (1, E), jnp.float32) * s,
        "w1": jax.random.normal(ks[5], (E, E4), jnp.float32) * s,
        "b1": jax.random.normal(ks[6], (1, E4), jnp.float32) * s,
        "w2": jax.random.normal(ks[7], (E4, E), jnp.float32) * s,
        "b2": jax.random.normal(ks[8], (1, E), jnp.float32) * s,
        "g1": jnp.ones((1, E), jnp.float32) + jax.random.normal(ks[9], (1, E), jnp.float32) * s,
        "beta1": jax.random.normal(ks[10], (1, E), jnp.float32) * s,
        "g2": jnp.ones((1, E), jnp.float32) + jax.random.normal(ks[11], (1, E), jnp.float32) * s,
        "beta2": jax.random.normal(ks[12], (1, E), jnp.float32) * s,
    }

    x = jax.random.normal(ks[13], (B, T, E), jnp.float32)

    ref = transformer_block_ref(x, params)

    # f32 matmul path: near-exact against the reference
    out_f32 = transformer_block(x, params, compute_dtype=jnp.float32)
    jax.block_until_ready(out_f32)
    assert out_f32.shape == (B, T, E)
    err32 = float(jnp.max(jnp.abs(out_f32 - ref)))
    assert err32 < 1e-2, f"f32 max abs diff {err32}"

    # default bf16 matmul operands (MXU rate), f32 accumulation: loose tolerance
    out_bf16 = transformer_block(x, params)
    jax.block_until_ready(out_bf16)
    assert out_bf16.shape == (B, T, E)
    err16 = float(jnp.max(jnp.abs(out_bf16 - ref)))
    assert err16 < 1e-1, f"bf16 max abs diff {err16}"

    print("KERNEL_OK")
</pallas_src>

<mosaic_0001>
module attributes {stable_mosaic.version = 11 : i64} {
  func.func @_kv_proj_kernel(%arg0: i32, %arg1: i32, %arg2: memref<1x8x32xf32, #tpu.memory_space<vmem>>, %arg3: memref<32x64xf32, #tpu.memory_space<vmem>>, %arg4: memref<1x32xf32, #tpu.memory_space<vmem>>, %arg5: memref<1x32xf32, #tpu.memory_space<vmem>>, %arg6: memref<1x8x8x8xf32, #tpu.memory_space<vmem>>) attributes {dimension_semantics = [#tpu.dimension_semantics<parallel>, #tpu.dimension_semantics<parallel>], iteration_bounds = array<i64: 2, 1>, scalar_prefetch = 0 : i64, scratch_operands = 0 : i64, tpu.core_type = #tpu.core_type<tc>, window_params = [{transform_indices = @transform_0, window_bounds = array<i64: 1, 8, 32>}, {pipeline_mode = #tpu.pipeline_mode<synchronous>, transform_indices = @transform_1, window_bounds = array<i64: 32, 64>}, {pipeline_mode = #tpu.pipeline_mode<synchronous>, transform_indices = @transform_2, window_bounds = array<i64: 1, 32>}, {pipeline_mode = #tpu.pipeline_mode<synchronous>, transform_indices = @transform_3, window_bounds = array<i64: 1, 32>}, {transform_indices = @transform_4, window_bounds = array<i64: 1, 8, 8, 8>}]} {
    %c0 = arith.constant 0 : index
    %c0_0 = arith.constant 0 : index
    %c0_1 = arith.constant 0 : index
    %0 = vector.load %arg2[%c0, %c0_0, %c0_1] : memref<1x8x32xf32, #tpu.memory_space<vmem>>, vector<1x8x32xf32>
    %1 = vector.shape_cast %0 : vector<1x8x32xf32> to vector<8x32xf32>
    %c0_2 = arith.constant 0 : index
    %c0_3 = arith.constant 0 : index
    %2 = vector.load %arg4[%c0_2, %c0_3] : memref<1x32xf32, #tpu.memory_space<vmem>>, vector<1x32xf32>
    %3 = vector.shape_cast %2 : vector<1x32xf32> to vector<32xf32>
    %c0_4 = arith.constant 0 : index
    %c0_5 = arith.constant 0 : index
    %4 = vector.load %arg5[%c0_4, %c0_5] : memref<1x32xf32, #tpu.memory_space<vmem>>, vector<1x32xf32>
    %5 = vector.shape_cast %4 : vector<1x32xf32> to vector<32xf32>
    %cst = arith.constant dense<0.000000e+00> : vector<8xf32>
    %6 = vector.multi_reduction <add>, %1, %cst [1] : vector<8x32xf32> to vector<8xf32>
    %7 = vector.shape_cast %6 : vector<8xf32> to vector<8x1xf32>
    %cst_6 = arith.constant 3.200000e+01 : f32
    %8 = vector.broadcast %cst_6 : f32 to vector<8x1xf32>
    %9 = arith.divf %7, %8 : vector<8x1xf32>
    %10 = vector.broadcast %9 : vector<8x1xf32> to vector<8x32xf32>
    %11 = arith.subf %1, %10 : vector<8x32xf32>
    %12 = arith.mulf %11, %11 : vector<8x32xf32>
    %cst_7 = arith.constant dense<0.000000e+00> : vector<8xf32>
    %13 = vector.multi_reduction <add>, %12, %cst_7 [1] : vector<8x32xf32> to vector<8xf32>
    %14 = vector.shape_cast %13 : vector<8xf32> to vector<8x1xf32>
    %cst_8 = arith.constant 3.200000e+01 : f32
    %15 = vector.broadcast %cst_8 : f32 to vector<8x1xf32>
    %16 = arith.divf %14, %15 : vector<8x1xf32>
    %17 = vector.broadcast %9 : vector<8x1xf32> to vector<8x32xf32>
    %18 = arith.subf %1, %17 : vector<8x32xf32>
    %cst_9 = arith.constant 9.99999974E-6 : f32
    %19 = vector.broadcast %cst_9 : f32 to vector<8x1xf32>
    %20 = arith.addf %16, %19 : vector<8x1xf32>
    %21 = math.rsqrt %20 : vector<8x1xf32>
    %22 = vector.broadcast %21 : vector<8x1xf32> to vector<8x32xf32>
    %23 = arith.mulf %18, %22 : vector<8x32xf32>
    %24 = vector.shape_cast %3 : vector<32xf32> to vector<1x32xf32>
    %25 = vector.broadcast %24 : vector<1x32xf32> to vector<8x32xf32>
    %26 = arith.mulf %23, %25 : vector<8x32xf32>
    %27 = vector.shape_cast %5 : vector<32xf32> to vector<1x32xf32>
    %28 = vector.broadcast %27 : vector<1x32xf32> to vector<8x32xf32>
    %29 = arith.addf %26, %28 : vector<8x32xf32>
    %c0_10 = arith.constant 0 : index
    %c0_11 = arith.constant 0 : index
    %30 = vector.load %arg3[%c0_10, %c0_11] : memref<32x64xf32, #tpu.memory_space<vmem>>, vector<32x64xf32>
    %cst_12 = arith.constant dense<0.000000e+00> : vector<8x64xf32>
    %31 = tpu.matmul %29, %30, %cst_12 {dimension_numbers = #tpu.dot_dimension_numbers<[1], [0], [0], [1], [0, 0, 1, 1], [], []>} : vector<8x32xf32>, vector<32x64xf32>, vector<8x64xf32> -> vector<8x64xf32>
    %32 = vector.extract_strided_slice %31 {offsets = [0, 0], sizes = [8, 8], strides = [1, 1]} : vector<8x64xf32> to vector<8x8xf32>
    %33 = vector.extract_strided_slice %31 {offsets = [0, 8], sizes = [8, 8], strides = [1, 1]} : vector<8x64xf32> to vector<8x8xf32>
    %34 = vector.extract_strided_slice %31 {offsets = [0, 16], sizes = [8, 8], strides = [1, 1]} : vector<8x64xf32> to vector<8x8xf32>
    %35 = vector.extract_strided_slice %31 {offsets = [0, 24], sizes = [8, 8], strides = [1, 1]} : vector<8x64xf32> to vector<8x8xf32>
    %36 = vector.extract_strided_slice %31 {offsets = [0, 32], sizes = [8, 8], strides = [1, 1]} : vector<8x64xf32> to vector<8x8xf32>
    %37 = vector.extract_strided_slice %31 {offsets = [0, 40], sizes = [8, 8], strides = [1, 1]} : vector<8x64xf32> to vector<8x8xf32>
    %38 = vector.extract_strided_slice %31 {offsets = [0, 48], sizes = [8, 8], strides = [1, 1]} : vector<8x64xf32> to vector<8x8xf32>
    %39 = vector.extract_strided_slice %31 {offsets = [0, 56], sizes = [8, 8], strides = [1, 1]} : vector<8x64xf32> to vector<8x8xf32>
    %40 = vector.shape_cast %32 : vector<8x8xf32> to vector<1x8x8xf32>
    %41 = vector.shape_cast %33 : vector<8x8xf32> to vector<1x8x8xf32>
    %42 = vector.shape_cast %34 : vector<8x8xf32> to vector<1x8x8xf32>
    %43 = vector.shape_cast %35 : vector<8x8xf32> to vector<1x8x8xf32>
    %44 = vector.shape_cast %36 : vector<8x8xf32> to vector<1x8x8xf32>
    %45 = vector.shape_cast %37 : vector<8x8xf32> to vector<1x8x8xf32>
    %46 = vector.shape_cast %38 : vector<8x8xf32> to vector<1x8x8xf32>
    %47 = vector.shape_cast %39 : vector<8x8xf32> to vector<1x8x8xf32>
    %48 = tpu.concatenate %40, %41, %42, %43, %44, %45, %46, %47 in 0 : vector<1x8x8xf32>, vector<1x8x8xf32>, vector<1x8x8xf32>, vector<1x8x8xf32>, vector<1x8x8xf32>, vector<1x8x8xf32>, vector<1x8x8xf32>, vector<1x8x8xf32> -> vector<8x8x8xf32>
    %c0_13 = arith.constant 0 : index
    %c0_14 = arith.constant 0 : index
    %c0_15 = arith.constant 0 : index
    %c0_16 = arith.constant 0 : index
    %49 = vector.load %arg6[%c0_13, %c0_14, %c0_15, %c0_16] : memref<1x8x8x8xf32, #tpu.memory_space<vmem>>, vector<1x8x8x8xf32>
    %50 = vector.shape_cast %49 : vector<1x8x8x8xf32> to vector<8x8x8xf32>
    %51 = vector.shape_cast %48 : vector<8x8x8xf32> to vector<1x8x8x8xf32>
    tpu.vector_store %arg6[%c0_13, %c0_14, %c0_15, %c0_16], %51 {strides = array<i32>} : memref<1x8x8x8xf32, #tpu.memory_space<vmem>>, vector<1x8x8x8xf32>,
    return
  }
  func.func @transform_0(%arg0: i32, %arg1: i32) -> (i32, i32, i32) {
    %c0_i32 = arith.constant 0 : i32
    %c0_i32_0 = arith.constant 0 : i32
    return %arg0, %arg1, %c0_i32 : i32, i32, i32
  }
  func.func @transform_1(%arg0: i32, %arg1: i32) -> (i32, i32) {
    %c0_i32 = arith.constant 0 : i32
    %c0_i32_0 = arith.constant 0 : i32
    %c0_i32_1 = arith.constant 0 : i32
    return %c0_i32, %c0_i32_0 : i32, i32
  }
  func.func @transform_2(%arg0: i32, %arg1: i32) -> (i32, i32) {
    %c0_i32 = arith.constant 0 : i32
    %c0_i32_0 = arith.constant 0 : i32
    %c0_i32_1 = arith.constant 0 : i32
    return %c0_i32, %c0_i32_0 : i32, i32
  }
  func.func @transform_3(%arg0: i32, %arg1: i32) -> (i32, i32) {
    %c0_i32 = arith.constant 0 : i32
    %c0_i32_0 = arith.constant 0 : i32
    %c0_i32_1 = arith.constant 0 : i32
    return %c0_i32, %c0_i32_0 : i32, i32
  }
  func.func @transform_4(%arg0: i32, %arg1: i32) -> (i32, i32, i32, i32) {
    %c0_i32 = arith.constant 0 : i32
    %c0_i32_0 = arith.constant 0 : i32
    %c0_i32_1 = arith.constant 0 : i32
    return %arg0, %c0_i32, %arg1, %c0_i32_0 : i32, i32, i32, i32
  }
}

</mosaic_0001>

<llo_original>
// kernel: tpu_custom_call.1
$region0: #{tpu_custom_call.1}
  #allocation0 [shape = 'u32[]', space=smem, size = 0x4, offset = 0x4, fixed_abs, tag = 'smem constant byte address 0x4 - core index']
  #allocation1 [shape = 'u32[72,128]{1,0:T(1,128)}', space=vmem, size = 0x9000, scoped, tag = 'internal scratch']
  %s0 = inlined_call_operand.hbm [shape: f32[2,8,32], index: 0, kind: input, shape index: {}]
  %s1 = inlined_call_operand.hbm [shape: f32[32,64], index: 1, kind: input, shape index: {}]
  %s2 = inlined_call_operand.vmem [shape: f32[1,32], index: 2, kind: input, shape index: {}]
  %s3 = inlined_call_operand.vmem [shape: f32[1,32], index: 3, kind: input, shape index: {}]
  %s4 = inlined_call_operand.hbm [shape: f32[2,8,8,8], index: 4, kind: output, shape index: {}]
  %s5 = sld [smem:[#allocation0]]
  $region57: #{tpu_custom_call.1} parent=0
    _
  %s7 = ssub.s32 1, %s5
  %s8 = scalar_select 0, %s7, %s5
  $region1: #{tpu_custom_call.1} parent=0
    #allocation2 [shape = 'u8[8192]{0}', space=vmem, size = 0x2000, scoped, tag = 'input window, operand 0']
    #allocation3 [shape = 's32[2]{0}', space=sflag, size = 0x8, scoped, tag = 'scoped memory for tpu_custom_call.1']
    #allocation4 [shape = 's32[2]{0}', space=sflag, size = 0x8, scoped, tag = 'scoped memory for tpu_custom_call.1']
    #allocation5 [shape = 'u8[16384]{0}', space=vmem, size = 0x4000, scoped, tag = 'input window, operand 1, single buffered']
    #allocation6 [shape = 's32[1]{0}', space=sflag, size = 0x4, scoped, tag = 'scoped memory for tpu_custom_call.1']
    #allocation7 [shape = 'u8[65536]{0}', space=vmem, size = 0x10000, scoped, tag = 'output window, operand 0']
    %9 = vsyncpa [#allocation3], 0
    %s10 = scalar_lea.sflag [#allocation3], 1
    %11 = vsyncpa %s10, 0
    %12 = vsyncpa [#allocation6], 0
    %13 = vsyncpa [#allocation4], 0
    %s14 = scalar_lea.sflag [#allocation4], 1
    %15 = vsyncpa %s14, 0
    loop: start=0, step=1, limit=4
    $region2: #{tpu_custom_call.1} parent=1 // loop_pre_header
      _
    $region3: #{tpu_custom_call.1} parent=1 // loop_header
      %s17 = sphi 0, %s21
      %p18 = scmp.ge.s32.totalorder %s17, 4
      %s24 = sphi 0, %s36
      %s25 = sphi 0, %s32
      %s26 = sphi 0, %s24
      %s27 = sphi 0, %s25
      %s28 = sphi 0, %s26
      %s29 = sphi 0, %s27
      %s41 = sphi 0, %s43
      %s44 = sphi 0, %s41
      %s45 = sphi 0, %s44
      %s61 = sphi 0, %s45
      %s65 = sphi 0, %s65
      %s67 = sphi 0, %s65
      %s68 = sphi 0, %s67
      %s82 = sphi 0, %s68
      %s86 = sphi 0, %s86
      %s88 = sphi 0, %s86
      %s89 = sphi 0, %s88
      %s103 = sphi 0, %s89
      %s107 = sphi 0, %s107
      %s109 = sphi 0, %s107
      %s110 = sphi 0, %s109
      %s124 = sphi 0, %s110
      %s132 = sphi 0, %s134
      %s135 = sphi 0, %s132
      %s136 = sphi 0, %s135
      %s152 = sphi 0, %s136
    $region4: #{tpu_custom_call.1} parent=1 // loop_header_branch
      %20 = sbr.rel (%p18) target = $region8
    $region5: #{tpu_custom_call.1} parent=1 // loop_body
      %s22 = ssub.s32 %s17, 1
      %s23 = ssub.s32 %s17, 2
      %s30 = sadd.s32 1, %s25
      %p31 = scmp.ge.s32.totalorder %s30, 1
      %s32 = scalar_select %p31, 0, %s30
      %s33 = sadd.s32 1, %s24
      %s34 = scalar_select %p31, %s33, %s24
      %p35 = scmp.ge.s32.totalorder %s34, 2
      %s36 = scalar_select %p35, 0, %s34
      %s37 = ssub.s32 %s24, %s36
      %s38 = ssub.s32 %s25, %s32
      %s39 = sor.u32 %s37, %s38
      %p40 = scmp.eq.s32.totalorder %s39, 0
      %s42 = sadd.s32 %s41, 1
      %s43 = scalar_select %p40, %s41, %s42
      %p46 = pneg %p40
      %p47 = scmp.eq.s32.totalorder %s17, 1
      %p48 = por %p46, %p47
      %p49 = scmp.ne.s32.totalorder %s41, %s44
      %p50 = scmp.eq.s32.totalorder %s17, 0
      %p51 = por %p49, %p50
      %p52 = scmp.ne.s32.totalorder %s41, %s44
      %p53 = scmp.eq.s32.totalorder %s22, 1
      %p54 = por %p52, %p53
      %p55 = scmp.ne.s32.totalorder %s44, %s45
      %p56 = scmp.eq.s32.totalorder %s22, 0
      %p57 = por %p55, %p56
      %p58 = scmp.ne.s32.totalorder %s44, %s45
      %p59 = scmp.eq.s32.totalorder %s23, 1
      %p60 = por %p58, %p59
      %p62 = scmp.ne.s32.totalorder %s45, %s61
      %p63 = scmp.eq.s32.totalorder %s23, 0
      %p64 = por %p62, %p63
      %s66 = sadd.s32 %s65, 1
      %p69 = scmp.eq.s32.totalorder %s17, 1
      %p70 = scmp.ne.s32.totalorder %s65, %s67
      %p71 = scmp.eq.s32.totalorder %s17, 0
      %p72 = por %p70, %p71
      %p73 = scmp.ne.s32.totalorder %s65, %s67
      %p74 = scmp.eq.s32.totalorder %s22, 1
      %p75 = por %p73, %p74
      %p76 = scmp.ne.s32.totalorder %s67, %s68
      %p77 = scmp.eq.s32.totalorder %s22, 0
      %p78 = por %p76, %p77
      %p79 = scmp.ne.s32.totalorder %s67, %s68
      %p80 = scmp.eq.s32.totalorder %s23, 1
      %p81 = por %p79, %p80
      %p83 = scmp.ne.s32.totalorder %s68, %s82
      %p84 = scmp.eq.s32.totalorder %s23, 0
      %p85 = por %p83, %p84
      %s87 = sadd.s32 %s86, 1
      %p90 = scmp.eq.s32.totalorder %s17, 1
      %p91 = scmp.ne.s32.totalorder %s86, %s88
      %p92 = scmp.eq.s32.totalorder %s17, 0
      %p93 = por %p91, %p92
      %p94 = scmp.ne.s32.totalorder %s86, %s88
      %p95 = scmp.eq.s32.totalorder %s22, 1
      %p96 = por %p94, %p95
      %p97 = scmp.ne.s32.totalorder %s88, %s89
      %p98 = scmp.eq.s32.totalorder %s22, 0
      %p99 = por %p97, %p98
      %p100 = scmp.ne.s32.totalorder %s88, %s89
      %p101 = scmp.eq.s32.totalorder %s23, 1
      %p102 = por %p100, %p101
      %p104 = scmp.ne.s32.totalorder %s89, %s103
      %p105 = scmp.eq.s32.totalorder %s23, 0
      %p106 = por %p104, %p105
      %s108 = sadd.s32 %s107, 1
      %p111 = scmp.eq.s32.totalorder %s17, 1
      %p112 = scmp.ne.s32.totalorder %s107, %s109
      %p113 = scmp.eq.s32.totalorder %s17, 0
      %p114 = por %p112, %p113
      %p115 = scmp.ne.s32.totalorder %s107, %s109
      %p116 = scmp.eq.s32.totalorder %s22, 1
      %p117 = por %p115, %p116
      %p118 = scmp.ne.s32.totalorder %s109, %s110
      %p119 = scmp.eq.s32.totalorder %s22, 0
      %p120 = por %p118, %p119
      %p121 = scmp.ne.s32.totalorder %s109, %s110
      %p122 = scmp.eq.s32.totalorder %s23, 1
      %p123 = por %p121, %p122
      %p125 = scmp.ne.s32.totalorder %s110, %s124
      %p126 = scmp.eq.s32.totalorder %s23, 0
      %p127 = por %p125, %p126
      %s128 = ssub.s32 %s24, %s36
      %s129 = ssub.s32 %s25, %s32
      %s130 = sor.u32 %s128, %s129
      %p131 = scmp.eq.s32.totalorder %s130, 0
      %s133 = sadd.s32 %s132, 1
      %s134 = scalar_select %p131, %s132, %s133
      %p137 = pneg %p131
      %p138 = scmp.eq.s32.totalorder %s17, 1
      %p139 = por %p137, %p138
      %p140 = scmp.ne.s32.totalorder %s132, %s135
      %p141 = scmp.eq.s32.totalorder %s17, 0
      %p142 = por %p140, %p141
      %p143 = scmp.ne.s32.totalorder %s132, %s135
      %p144 = scmp.eq.s32.totalorder %s22, 1
      %p145 = por %p143, %p144
      %p146 = scmp.ne.s32.totalorder %s135, %s136
      %p147 = scmp.eq.s32.totalorder %s22, 0
      %p148 = por %p146, %p147
      %p149 = scmp.ne.s32.totalorder %s135, %s136
      %p150 = scmp.eq.s32.totalorder %s23, 1
      %p151 = por %p149, %p150
      %p153 = scmp.ne.s32.totalorder %s136, %s152
      %p154 = scmp.eq.s32.totalorder %s23, 0
      %p155 = por %p153, %p154
      %p156 = scmp.le.s32.totalorder 1, %s17
      %p157 = scmp.lt.s32.totalorder %s17, 3
      %p158 = pnand %p156, %p157
      %p159 = pneg %p158
      // Predicated region
      $region9: #{tpu_custom_call.1} parent=5 // pred_check
        _
      $region10: #{tpu_custom_call.1} parent=5 // pred_check_branch
        %161 = sbr.rel (%p158) target = $region12
      $region11: #{tpu_custom_call.1} parent=5 // pred_region
        %s162 = ssub.s32 %s17, 1
        // Predicated region
        $region13: #{tpu_custom_call.1} parent=11 // pred_check
          %p163 = pneg %p78
        $region14: #{tpu_custom_call.1} parent=11 // pred_check_branch
          %165 = sbr.rel (%p163) target = $region16
        $region15: #{tpu_custom_call.1} parent=11 // pred_region
          %167 = vsyncadd [#allocation6], 0
          %s168 = sshll.u32 %s1, 4
          %s169 = int_to_ptr.hbm [resolvable:$true] %s168
          %s170 = sshll.u32 [#allocation5], 4
          %s171 = int_to_ptr.vmem [resolvable:$true] %s170
          %176 = dma.hbm_to_vmem [thread:$0]  %s169, 512, %s171, [#allocation6], 128, 128, 8
        $region16: #{tpu_custom_call.1} parent=11 // pred_fallthru
          _
        // Predicated region
        $region17: #{tpu_custom_call.1} parent=11 // pred_check
          %p177 = pneg %p99
        $region18: #{tpu_custom_call.1} parent=11 // pred_check_branch
          %179 = sbr.rel (%p177) target = $region20
        $region19: #{tpu_custom_call.1} parent=11 // pred_region
          _
        $region20: #{tpu_custom_call.1} parent=11 // pred_fallthru
          _
        // Predicated region
        $region21: #{tpu_custom_call.1} parent=11 // pred_check
          %p180 = pneg %p120
        $region22: #{tpu_custom_call.1} parent=11 // pred_check_branch
          %182 = sbr.rel (%p180) target = $region24
        $region23: #{tpu_custom_call.1} parent=11 // pred_region
          _
        $region24: #{tpu_custom_call.1} parent=11 // pred_fallthru
          _
      $region12: #{tpu_custom_call.1} parent=5 // pred_fallthru
        _
      %p183 = scmp.lt.s32.totalorder %s17, 2
      // Predicated region
      $region25: #{tpu_custom_call.1} parent=5 // pred_check
        %p184 = pneg %p183
      $region26: #{tpu_custom_call.1} parent=5 // pred_check_branch
        %186 = sbr.rel (%p184) target = $region28
      $region27: #{tpu_custom_call.1} parent=5 // pred_region
        // Predicated region
        $region29: #{tpu_custom_call.1} parent=27 // pred_check
          %p187 = pneg %p51
        $region30: #{tpu_custom_call.1} parent=27 // pred_check_branch
          %189 = sbr.rel (%p187) target = $region32
        $region31: #{tpu_custom_call.1} parent=27 // pred_region
          %s190 = sand.u32 %s41, 1
          %s191 = scalar_lea.sflag [#allocation3], %s190
          %s192 = sand.u32 %s41, 1
          %s193 = smul.addr %s192, 8
          %s194 = scalar_lea.vmem [#allocation2], %s193
          %196 = vsyncadd %s191, 0
          %s197 = sadd.s32 %s25, %s24
          %s198 = smul.addr %s197, 8
          %s199 = scalar_lea.hbm %s0, %s198
          %s201 = sshll.u32 %s199, 4
          %s202 = int_to_ptr.hbm [resolvable:$true] %s201
          %s203 = sshll.u32 %s194, 4
          %s204 = int_to_ptr.vmem [resolvable:$true] %s203
          %206 = dma.hbm_to_vmem [thread:$0]  %s202, 128, %s204, %s191
        $region32: #{tpu_custom_call.1} parent=27 // pred_fallthru
          _
      $region28: #{tpu_custom_call.1} parent=5 // pred_fallthru
        _
      %p207 = scmp.le.s32.totalorder 1, %s17
      %p208 = scmp.lt.s32.totalorder %s17, 3
      %p209 = pnand %p207, %p208
      %p210 = pneg %p209
      // Predicated region
      $region33: #{tpu_custom_call.1} parent=5 // pred_check
        _
      $region34: #{tpu_custom_call.1} parent=5 // pred_check_branch
        %212 = sbr.rel (%p209) target = $region36
      $region35: #{tpu_custom_call.1} parent=5 // pred_region
        %s213 = ssub.s32 %s17, 1
        %s214 = sand.u32 %s44, 1
        %s215 = scalar_lea.sflag [#allocation3], %s214
        %s216 = sand.u32 %s44, 1
        %s217 = smul.addr %s216, 8
        %s218 = scalar_lea.vmem [#allocation2], %s217
        // Predicated region
        $region37: #{tpu_custom_call.1} parent=35 // pred_check
          %p219 = pneg %p57
        $region38: #{tpu_custom_call.1} parent=35 // pred_check_branch
          %221 = sbr.rel (%p219) target = $region40
        $region39: #{tpu_custom_call.1} parent=35 // pred_region
          %223 = dma.done %s215, 128
        $region40: #{tpu_custom_call.1} parent=35 // pred_fallthru
          _
        // Predicated region
        $region41: #{tpu_custom_call.1} parent=35 // pred_check
          %p224 = pneg %p78
        $region42: #{tpu_custom_call.1} parent=35 // pred_check_branch
          %226 = sbr.rel (%p224) target = $region44
        $region43: #{tpu_custom_call.1} parent=35 // pred_region
          %228 = dma.done [#allocation6], 512
        $region44: #{tpu_custom_call.1} parent=35 // pred_fallthru
          _
        %s229 = sand.u32 %s44, 1
        %s230 = scalar_lea.sflag [#allocation3], %s229
        %s231 = sand.u32 %s44, 1
        %s232 = smul.addr %s231, 8
        %s233 = scalar_lea.vmem [#allocation2], %s232
        %p234 = pneg %p57
        %p235 = pneg %p54
        %p236 = pneg %p78
        %p237 = pneg %p75
        %p238 = pneg %p99
        %p239 = pneg %p96
        %p240 = pneg %p120
        %p241 = pneg %p117
        %p242 = pneg %p148
        %p243 = pneg %p145
        %s244 = sand.u32 %s135, 1
        %s245 = scalar_lea.sflag [#allocation4], %s244
        %s246 = sand.u32 %s135, 1
        %s247 = smul.addr %s246, 64
        %s248 = scalar_lea.vmem [#allocation7], %s247
        %v249 = vld [vmem:[%s218] sm:$0xff]
        %v250 = vld [vmem:[%s2] sm:$0x1]
        %v251 = vld [vmem:[%s3] sm:$0x1]
        %vm252 = vcmask 261120
        %v253 = vsel %vm252, %v249, 0.0
        %254 = vadd.xlane.f32.xlu0 %v253
        %v255 = vpop.xlane.xlu0 %254
        %v256 = vrcp.pop 32.0
        %v257 = vmul.f32 32.0, %v256
        %v258 = vsub.f32 1.0, %v257
        %v259 = vmul.f32 %v256, %v258
        %v260 = vadd.f32 %v256, %v259
        %vm261 = vweird.f32 %v256
        %v262 = vsel %vm261, %v256, %v260
        %v263 = vmul.f32 %v255, %v262
        %v264 = vsub.f32 %v249, %v263
        %v265 = vmul.f32 %v264, %v264
        %v266 = vsel %vm252, %v265, 0.0
        %267 = vadd.xlane.f32.xlu0 %v266
        %v268 = vpop.xlane.xlu0 %267
        %v269 = vmul.f32 %v268, %v262
        %v270 = vadd.f32 %v269, 1e-05
        %v271 = vrsqrt.pop %v270
        %v272 = vmul.f32 %v271, %v270
        %v273 = vmul.f32 %v272, %v271
        %v274 = vmul.f32 0.5, %v273
        %v275 = vsub.f32 1.5, %v274
        %v276 = vmul.f32 %v271, %v275
        %vm277 = vweird.f32 %v270
        %vm278 = vweird.f32 %v271
        %vm279 = vmor %vm277, %vm278
        %v280 = vsel %vm279, %v271, %v276
        %v281 = vmul.f32 %v264, %v280
        %v283 = vperm.slane %v250, 0
        %v285 = vmul.f32 %v281, %v283
        %v287 = vperm.slane %v251, 0
        %v289 = vadd.f32 %v285, %v287
        %v290 = vld [vmem:[#allocation5] sm:$0xff]
        %v291 = vld [vmem:[#allocation5 + $0x8] sm:$0xff]
        %v292 = vld [vmem:[#allocation5 + $0x10] sm:$0xff]
        %v293 = vld [vmem:[#allocation5 + $0x18] sm:$0xff]
        %v295 = vsel %vm252, %v289, 0
        %297 = vmatpush.msra.mxu0 0.0
        %298 = vmatpush.msra.mxu0 0.0
        %299 = vmatpush.msra.mxu0 0.0
        %300 = vmatpush.msra.mxu0 0.0
        %301 = vmatpush.msra.mxu0 0.0
        %302 = vmatpush.msra.mxu0 0.0
        %303 = vmatpush.msra.mxu0 0.0
        %304 = vmatpush.msra.mxu0 0.0
        %305 = vmatpush.msra.mxu0 0.0
        %306 = vmatpush.msra.mxu0 0.0
        %307 = vmatpush.msra.mxu0 0.0
        %308 = vmatpush.msra.mxu0 0.0
        %309 = vmatpush.msra.mxu0 %v293
        %310 = vmatpush.msra.mxu0 %v292
        %311 = vmatpush.msra.mxu0 %v291
        %312 = vmatpush.msra.mxu0 %v290
        %313 = vmatmul.f32.gmra.mxu0 %v295
        %v314 = vpop.f32.mrf.mxu0
        %v315 = vadd.f32 0.0, %v314
        %316 = vdwg.mxu0
        %318 = vrot.lane.b32.xlu0 %v315, 120
        %v319 = vpop.permute.xlu0 %318
        %321 = vrot.lane.b32.xlu0 %v315, 112
        %v322 = vpop.permute.xlu0 %321
        %324 = vrot.lane.b32.xlu0 %v315, 104
        %v325 = vpop.permute.xlu0 %324
        %327 = vrot.lane.b32.xlu0 %v315, 96
        %v328 = vpop.permute.xlu0 %327
        %330 = vrot.lane.b32.xlu0 %v315, 88
        %v331 = vpop.permute.xlu0 %330
        %333 = vrot.lane.b32.xlu0 %v315, 80
        %v334 = vpop.permute.xlu0 %333
        %336 = vrot.lane.b32.xlu0 %v315, 72
        %v337 = vpop.permute.xlu0 %336
        %vm339 = vcmask 64512
        %340 = vst.msk [vmem:[%s248] sm:$0xff] %vm339, %v315
        %341 = vst.msk [vmem:[%s248 + $0x8] sm:$0xff] %vm339, %v319
        %342 = vst.msk [vmem:[%s248 + $0x10] sm:$0xff] %vm339, %v322
        %343 = vst.msk [vmem:[%s248 + $0x18] sm:$0xff] %vm339, %v325
        %344 = vst.msk [vmem:[%s248 + $0x20] sm:$0xff] %vm339, %v328
        %345 = vst.msk [vmem:[%s248 + $0x28] sm:$0xff] %vm339, %v331
        %346 = vst.msk [vmem:[%s248 + $0x30] sm:$0xff] %vm339, %v334
        %347 = vst.msk [vmem:[%s248 + $0x38] sm:$0xff] %vm339, %v337
        %s348 = sand.u32 %s135, 1
        %s349 = scalar_lea.sflag [#allocation4], %s348
        %s350 = sand.u32 %s135, 1
        %s351 = smul.addr %s350, 64
        %s352 = scalar_lea.vmem [#allocation7], %s351
        // Predicated region
        $region45: #{tpu_custom_call.1} parent=35 // pred_check
          %p353 = pneg %p145
        $region46: #{tpu_custom_call.1} parent=35 // pred_check_branch
          %355 = sbr.rel (%p353) target = $region48
        $region47: #{tpu_custom_call.1} parent=35 // pred_region
          %357 = vsyncadd %s349, 0
          %s358 = smul.addr %s26, 8
          %s359 = sadd.s32 %s27, %s358
          %s360 = smul.addr %s359, 8
          %s361 = scalar_lea.hbm %s4, %s360
          %s362 = sshll.u32 %s352, 4
          %s363 = int_to_ptr.vmem [resolvable:$true] %s362
          %s364 = sshll.u32 %s361, 4
          %s365 = int_to_ptr.hbm [resolvable:$true] %s364
          %370 = dma.vmem_to_hbm [thread:$0]  %s363, 1024, %s365, %s349, 128, 128, 8
        $region48: #{tpu_custom_call.1} parent=35 // pred_fallthru
          _
      $region36: #{tpu_custom_call.1} parent=5 // pred_fallthru
        _
      %p371 = scmp.le.s32.totalorder 2, %s17
      // Predicated region
      $region49: #{tpu_custom_call.1} parent=5 // pred_check
        %p372 = pneg %p371
      $region50: #{tpu_custom_call.1} parent=5 // pred_check_branch
        %374 = sbr.rel (%p372) target = $region52
      $region51: #{tpu_custom_call.1} parent=5 // pred_region
        %s375 = ssub.s32 %s17, 2
        // Predicated region
        $region53: #{tpu_custom_call.1} parent=51 // pred_check
          %p376 = pneg %p151
        $region54: #{tpu_custom_call.1} parent=51 // pred_check_branch
          %378 = sbr.rel (%p376) target = $region56
        $region55: #{tpu_custom_call.1} parent=51 // pred_region
          %s379 = sand.u32 %s136, 1
          %s380 = scalar_lea.sflag [#allocation4], %s379
          %s381 = sand.u32 %s136, 1
          %s382 = smul.addr %s381, 64
          %s383 = scalar_lea.vmem [#allocation7], %s382
          %385 = dma.done %s380, 1024
        $region56: #{tpu_custom_call.1} parent=51 // pred_fallthru
          _
      $region52: #{tpu_custom_call.1} parent=5 // pred_fallthru
        _
    $region6: #{tpu_custom_call.1} parent=1 // loop_footer
      %s21 = sadd.s32 1, %s17
    $region7: #{tpu_custom_call.1} parent=1 // loop_footer_branch
      %16 = sbr.rel target = $region3
    $region8: #{tpu_custom_call.1} parent=1 // loop_exit
      _
    %386 = vsyncpa [#allocation3], 1
    %s387 = scalar_lea.sflag [#allocation3], 1
    %388 = vsyncpa %s387, 1
    %389 = vsyncpa [#allocation6], 1
    %390 = vsyncpa [#allocation4], 1
    %s391 = scalar_lea.sflag [#allocation4], 1
    %392 = vsyncpa %s391, 1

</llo_original>
